<compile_context>
chip_gen: v7x
topology: tpu7x:2x2x1
jax: 0.10.0
libtpu: 0.0.40
codegen_flags: <defaults>
</compile_context>

<pallas_src>
import jax
import jax.numpy as jnp
from jax import lax
from jax.experimental import pallas as pl
from jax.experimental.pallas import tpu as pltpu


_LANE = 128
_TARGET_BLOCK_ELEMS = 256 * 1024        # 1 MiB of f32 per block per stream
_INV_SQRT2 = 0.7071067811865476


def _gelu_exact(x):
    # Exact (erf-based) GELU, matching torch.nn.functional.gelu default.
    return 0.5 * x * (1.0 + lax.erf(x * _INV_SQRT2))


def _complex_gelu_kernel(re_ref, im_ref, re_out_ref, im_out_ref):
    re_out_ref[...] = _gelu_exact(re_ref[...])
    im_out_ref[...] = _gelu_exact(im_ref[...])


def _choose_width(total):
    """Widest lane-dense slab width (multiple of 128) that divides `total`."""
    for w in (1024, 512, 256, _LANE):
        if total % w == 0:
            return w, 0
    return _LANE, (-total) % _LANE


def complex_gelu(x):
    """Apply GELU independently to real and imaginary parts of a complex array.

    x: complex64 array of any shape (e.g. NCHW).  Returns complex64 array of
    the same shape.
    """
    orig_shape = x.shape
    re = jnp.real(x).astype(jnp.float32).reshape(-1)
    im = jnp.imag(x).astype(jnp.float32).reshape(-1)
    total = re.shape[0]

    width, pad = _choose_width(total)
    if pad:
        # Rare path: only when the total element count is not a multiple of 128.
        re = jnp.pad(re, (0, pad))
        im = jnp.pad(im, (0, pad))
    rows = (total + pad) // width

    # Biggest tile up to ~1 MiB per buffer.  2 inputs + 2 outputs, double
    # buffered -> at most ~8 MiB of scoped VMEM: safe on v5e / v6e / v7x.
    max_rows = max(8, _TARGET_BLOCK_ELEMS // width)      # always a multiple of 8
    block_rows = rows if rows <= max_rows else max_rows  # full dim or 8-aligned
    grid = (pl.cdiv(rows, block_rows),)                  # partial last block OK

    spec = pl.BlockSpec((block_rows, width), lambda i: (i, 0))
    re2 = re.reshape(rows, width)
    im2 = im.reshape(rows, width)

    re_o, im_o = pl.pallas_call(
        _complex_gelu_kernel,
        out_shape=(
            jax.ShapeDtypeStruct((rows, width), jnp.float32),
            jax.ShapeDtypeStruct((rows, width), jnp.float32),
        ),
        grid=grid,
        in_specs=[spec, spec],
        out_specs=(spec, spec),
        compiler_params=pltpu.CompilerParams(
            dimension_semantics=("parallel",),
            vmem_limit_bytes=32 * 1024 * 1024,
        ),
    )(re2, im2)

    re_flat = re_o.reshape(-1)
    im_flat = im_o.reshape(-1)
    if pad:
        re_flat = re_flat[:total]
        im_flat = im_flat[:total]
    return lax.complex(re_flat, im_flat).reshape(orig_shape)


if __name__ == "__main__":
    key = jax.random.PRNGKey(0)
    k1, k2 = jax.random.split(key)
    B, C, H, W = 2, 4, 16, 16  # NCHW, matching the PyTorch module's usage
    re_in = jax.random.normal(k1, (B, C, H, W), dtype=jnp.float32)
    im_in = jax.random.normal(k2, (B, C, H, W), dtype=jnp.float32)
    x = lax.complex(re_in, im_in)  # complex64

    fn = jax.jit(complex_gelu)
    out = jax.block_until_ready(fn(x))

    # Reference: exact GELU applied to real/imag separately.
    ref = lax.complex(
        jax.nn.gelu(re_in, approximate=False),
        jax.nn.gelu(im_in, approximate=False),
    )
    assert out.shape == x.shape and out.dtype == jnp.complex64
    assert jnp.allclose(jnp.real(out), jnp.real(ref), atol=1e-5, rtol=1e-5)
    assert jnp.allclose(jnp.imag(out), jnp.imag(ref), atol=1e-5, rtol=1e-5)

    print("KERNEL_OK")
</pallas_src>

<mosaic_0001>
module attributes {stable_mosaic.version = 11 : i64} {
  func.func @_complex_gelu_kernel(%arg0: i32, %arg1: memref<2x1024xf32, #tpu.memory_space<vmem>>, %arg2: memref<2x1024xf32, #tpu.memory_space<vmem>>, %arg3: memref<2x1024xf32, #tpu.memory_space<vmem>>, %arg4: memref<2x1024xf32, #tpu.memory_space<vmem>>) attributes {dimension_semantics = [#tpu.dimension_semantics<parallel>], iteration_bounds = array<i64: 1>, scalar_prefetch = 0 : i64, scratch_operands = 0 : i64, tpu.core_type = #tpu.core_type<tc>, window_params = [{transform_indices = @transform_0, window_bounds = array<i64: 2, 1024>}, {transform_indices = @transform_1, window_bounds = array<i64: 2, 1024>}, {transform_indices = @transform_2, window_bounds = array<i64: 2, 1024>}, {transform_indices = @transform_3, window_bounds = array<i64: 2, 1024>}]} {
    %c0 = arith.constant 0 : index
    %c0_0 = arith.constant 0 : index
    %0 = vector.load %arg1[%c0, %c0_0] : memref<2x1024xf32, #tpu.memory_space<vmem>>, vector<2x1024xf32>
    %cst = arith.constant 5.000000e-01 : f32
    %1 = vector.broadcast %cst : f32 to vector<2x1024xf32>
    %2 = arith.mulf %1, %0 : vector<2x1024xf32>
    %cst_1 = arith.constant 0.707106769 : f32
    %3 = vector.broadcast %cst_1 : f32 to vector<2x1024xf32>
    %4 = arith.mulf %0, %3 : vector<2x1024xf32>
    %5 = math.erf %4 : vector<2x1024xf32>
    %cst_2 = arith.constant 1.000000e+00 : f32
    %6 = vector.broadcast %cst_2 : f32 to vector<2x1024xf32>
    %7 = arith.addf %6, %5 : vector<2x1024xf32>
    %8 = arith.mulf %2, %7 : vector<2x1024xf32>
    %c0_3 = arith.constant 0 : index
    %c0_4 = arith.constant 0 : index
    %9 = vector.load %arg3[%c0_3, %c0_4] : memref<2x1024xf32, #tpu.memory_space<vmem>>, vector<2x1024xf32>
    tpu.vector_store %arg3[%c0_3, %c0_4], %8 {strides = array<i32>} : memref<2x1024xf32, #tpu.memory_space<vmem>>, vector<2x1024xf32>,
    %c0_5 = arith.constant 0 : index
    %c0_6 = arith.constant 0 : index
    %10 = vector.load %arg2[%c0_5, %c0_6] : memref<2x1024xf32, #tpu.memory_space<vmem>>, vector<2x1024xf32>
    %cst_7 = arith.constant 5.000000e-01 : f32
    %11 = vector.broadcast %cst_7 : f32 to vector<2x1024xf32>
    %12 = arith.mulf %11, %10 : vector<2x1024xf32>
    %cst_8 = arith.constant 0.707106769 : f32
    %13 = vector.broadcast %cst_8 : f32 to vector<2x1024xf32>
    %14 = arith.mulf %10, %13 : vector<2x1024xf32>
    %15 = math.erf %14 : vector<2x1024xf32>
    %cst_9 = arith.constant 1.000000e+00 : f32
    %16 = vector.broadcast %cst_9 : f32 to vector<2x1024xf32>
    %17 = arith.addf %16, %15 : vector<2x1024xf32>
    %18 = arith.mulf %12, %17 : vector<2x1024xf32>
    %c0_10 = arith.constant 0 : index
    %c0_11 = arith.constant 0 : index
    %19 = vector.load %arg4[%c0_10, %c0_11] : memref<2x1024xf32, #tpu.memory_space<vmem>>, vector<2x1024xf32>
    tpu.vector_store %arg4[%c0_10, %c0_11], %18 {strides = array<i32>} : memref<2x1024xf32, #tpu.memory_space<vmem>>, vector<2x1024xf32>,
    return
  }
  func.func @transform_0(%arg0: i32) -> (i32, i32) {
    %c0_i32 = arith.constant 0 : i32
    %c0_i32_0 = arith.constant 0 : i32
    return %arg0, %c0_i32 : i32, i32
  }
  func.func @transform_1(%arg0: i32) -> (i32, i32) {
    %c0_i32 = arith.constant 0 : i32
    %c0_i32_0 = arith.constant 0 : i32
    return %arg0, %c0_i32 : i32, i32
  }
  func.func @transform_2(%arg0: i32) -> (i32, i32) {
    %c0_i32 = arith.constant 0 : i32
    %c0_i32_0 = arith.constant 0 : i32
    return %arg0, %c0_i32 : i32, i32
  }
  func.func @transform_3(%arg0: i32) -> (i32, i32) {
    %c0_i32 = arith.constant 0 : i32
    %c0_i32_0 = arith.constant 0 : i32
    return %arg0, %c0_i32 : i32, i32
  }
}

</mosaic_0001>

<llo_original>
// kernel: custom-call.1
$region0: #{custom-call.1}
  %s0 = inlined_call_operand.hbm [shape: c64[2,4,16,16], index: 0, kind: input, shape index: {}]
  %s1 = inlined_call_operand.vmem [shape: f32[2,4,16,16], index: 1, kind: output, shape index: {}]
  %s2 = scalar_lea.hbm %s0, 2048
  $region1: #{custom-call.1} parent=0
    #allocation0 [shape = 's32[1]{0}', space=sflag, size = 0x4, scoped, tag = 'scoped memory for custom-call.1']
    %3 = vsyncpa [#allocation0], 0
    %s4 = sshll.u32 %s1, 4
    %s5 = int_to_ptr.vmem [resolvable:$true] %s4
    %7 = dma.hbm_to_vmem [thread:$0]  %s2, 2048, %s5, [#allocation0]
    %8 = dma.done [#allocation0], 2048
    %9 = vsyncpa [#allocation0], 1

// kernel: custom-call
$region0: #{custom-call}
  %s0 = inlined_call_operand.hbm [shape: c64[2,4,16,16], index: 0, kind: input, shape index: {}]
  %s1 = inlined_call_operand.vmem [shape: f32[2,4,16,16], index: 1, kind: output, shape index: {}]
  $region1: #{custom-call} parent=0
    #allocation0 [shape = 's32[1]{0}', space=sflag, size = 0x4, scoped, tag = 'scoped memory for custom-call']
    %2 = vsyncpa [#allocation0], 0
    %s3 = sshll.u32 %s1, 4
    %s4 = int_to_ptr.vmem [resolvable:$true] %s3
    %6 = dma.hbm_to_vmem [thread:$0]  %s0, 2048, %s4, [#allocation0]
    %7 = dma.done [#allocation0], 2048
    %8 = vsyncpa [#allocation0], 1

// kernel: custom-call.2
$region0: #{custom-call.2}
  %s0 = inlined_call_operand.vmem [shape: f32[2,4,16,16], index: 0, kind: input, shape index: {}]
  %s1 = inlined_call_operand.vmem [shape: f32[2,4,16,16], index: 1, kind: input, shape index: {}]
  %s2 = inlined_call_operand.hbm [shape: c64[2,4,16,16], index: 2, kind: output, shape index: {}]
  %s3 = scalar_lea.hbm %s2, 2048
  $region1: #{custom-call.2} parent=0
    #allocation0 [shape = 's32[1]{0}', space=sflag, size = 0x4, scoped, tag = 'scoped memory for custom-call.2']
    %4 = vsyncpa [#allocation0], 0
    %s5 = sshll.u32 %s0, 4
    %s6 = int_to_ptr.vmem [resolvable:$true] %s5
    %8 = dma.vmem_to_hbm [thread:$0]  %s6, 2048, %s2, [#allocation0]
    %9 = dma.done [#allocation0], 2048
    %10 = vsyncpa [#allocation0], 1
  $region2: #{custom-call.2} parent=0
    #allocation1 [shape = 's32[1]{0}', space=sflag, size = 0x4, scoped, tag = 'scoped memory for custom-call.2']
    %11 = vsyncpa [#allocation1], 0
    %s12 = sshll.u32 %s1, 4
    %s13 = int_to_ptr.vmem [resolvable:$true] %s12
    %15 = dma.vmem_to_hbm [thread:$0]  %s13, 2048, %s3, [#allocation1]
    %16 = dma.done [#allocation1], 2048
    %17 = vsyncpa [#allocation1], 1

// kernel: complex_gelu.1
$region0: #{complex_gelu.1}
  #allocation0 [shape = 'u32[]', space=smem, size = 0x4, offset = 0x4, fixed_abs, tag = 'smem constant byte address 0x4 - core index']
  #allocation1 [shape = 'u32[144,128]{1,0:T(1,128)}', space=vmem, size = 0x12000, scoped, tag = 'internal scratch']
  %s0 = inlined_call_operand.vmem [shape: f32[2,1024], index: 0, kind: input, shape index: {}]
  %s1 = inlined_call_operand.vmem [shape: f32[2,1024], index: 1, kind: input, shape index: {}]
  %s2 = inlined_call_operand.vmem [shape: f32[2,1024], index: 2, kind: output, shape index: {0}]
  %s3 = inlined_call_operand.vmem [shape: f32[2,1024], index: 3, kind: output, shape index: {1}]
  %4 = xla_tuple %s2, %s3
  %s5 = sld [smem:[#allocation0]]
  $region26: #{complex_gelu.1} parent=0
    _
  %s7 = ssub.s32 1, %s5
  %s8 = scalar_select 0, %s7, %s5
  // Predicated region
  $region2: #{complex_gelu.1} parent=0 // pred_check
    _
  $region3: #{complex_gelu.1} parent=0 // pred_check_branch
    %10 = sbr.rel (0) target = $region5
  $region4: #{complex_gelu.1} parent=0 // pred_region
    _
  $region5: #{complex_gelu.1} parent=0 // pred_fallthru
    _
  // Predicated region
  $region6: #{complex_gelu.1} parent=0 // pred_check
    _
  $region7: #{complex_gelu.1} parent=0 // pred_check_branch
    %12 = sbr.rel (0) target = $region9
  $region8: #{complex_gelu.1} parent=0 // pred_region
    _
  $region9: #{complex_gelu.1} parent=0 // pred_fallthru
    _
  %v13 = vld [vmem:[%s0] sm:$0xff]
  %v14 = vld [vmem:[%s0 + $0x8] sm:$0xff]
  %v15 = vmul.f32 %v13, 0.5
  %v16 = vmul.f32 %v14, 0.5
  %v17 = vmul.f32 %v13, 0.70710677
  %v18 = vmul.f32 %v14, 0.70710677
  %v19 = verf.f32.pop %v17
  %v20 = verf.f32.pop %v18
  %v21 = vadd.f32 %v19, 1.0
  %v22 = vadd.f32 %v20, 1.0
  %v23 = vmul.f32 %v15, %v21
  %v24 = vmul.f32 %v16, %v22
  %25 = vst [vmem:[%s2] sm:$0xff] %v23
  %26 = vst [vmem:[%s2 + $0x8] sm:$0xff] %v24
  %v27 = vld [vmem:[%s1] sm:$0xff]
  %v28 = vld [vmem:[%s1 + $0x8] sm:$0xff]
  %v29 = vmul.f32 %v27, 0.5
  %v30 = vmul.f32 %v28, 0.5
  %v31 = vmul.f32 %v27, 0.70710677
  %v32 = vmul.f32 %v28, 0.70710677
  %v33 = verf.f32.pop %v31
  %v34 = verf.f32.pop %v32
  %v35 = vadd.f32 %v33, 1.0
  %v36 = vadd.f32 %v34, 1.0
  %v37 = vmul.f32 %v29, %v35
  %v38 = vmul.f32 %v30, %v36
  %39 = vst [vmem:[%s3] sm:$0xff] %v37
  %40 = vst [vmem:[%s3 + $0x8] sm:$0xff] %v38
  // Predicated region
  $region10: #{complex_gelu.1} parent=0 // pred_check
    _
  $region11: #{complex_gelu.1} parent=0 // pred_check_branch
    %42 = sbr.rel (0) target = $region13
  $region12: #{complex_gelu.1} parent=0 // pred_region
    _
  $region13: #{complex_gelu.1} parent=0 // pred_fallthru
    _
  // Predicated region
  $region14: #{complex_gelu.1} parent=0 // pred_check
    _
  $region15: #{complex_gelu.1} parent=0 // pred_check_branch
    %44 = sbr.rel (0) target = $region17
  $region16: #{complex_gelu.1} parent=0 // pred_region
    _
  $region17: #{complex_gelu.1} parent=0 // pred_fallthru
    _
  // Predicated region
  $region18: #{complex_gelu.1} parent=0 // pred_check
    _
  $region19: #{complex_gelu.1} parent=0 // pred_check_branch
    %46 = sbr.rel (0) target = $region21
  $region20: #{complex_gelu.1} parent=0 // pred_region
    _
  $region21: #{complex_gelu.1} parent=0 // pred_fallthru
    _
  // Predicated region
  $region22: #{complex_gelu.1} parent=0 // pred_check
    _
  $region23: #{complex_gelu.1} parent=0 // pred_check_branch
    %48 = sbr.rel (0) target = $region25
  $region24: #{complex_gelu.1} parent=0 // pred_region
    _
  $region25: #{complex_gelu.1} parent=0 // pred_fallthru
    _

</llo_original>
